<compile_context>
chip_gen: v6e
topology: v6e:2x2x1
jax: 0.10.0
libtpu: 0.0.40
codegen_flags: <defaults>
</compile_context>

<pallas_src>
import functools
import math

import jax
import jax.numpy as jnp
from jax.experimental import pallas as pl
from jax.experimental.pallas import tpu as pltpu

_LANES = 128
_SUBLANE_ALIGN = 32                      # safe sublane multiple for f32/bf16/int8
_VMEM_TILE_BUDGET = 4 * 1024 * 1024      # combined x+t input tile bytes per grid step
_VMEM_LIMIT = 32 * 1024 * 1024


def _round_up(v, m):
    return (v + m - 1) // m * m


def _soft_logit_partial_kernel(x_ref, t_ref, o_ref, *, valid_elems):
    """Per-block partial sum of softplus(-t * x).

    x_ref: (blk_rows, C) logits block, native dtype.
    t_ref: (blk_rows, C) or (blk_rows, 1) target block, native dtype.
    o_ref: (1, C) f32 partial-sum row for this grid step.
    valid_elems: total number of valid row-major elements, or None when every
      element of every block is valid (no masking needed).
    """
    x = x_ref[...].astype(jnp.float32)
    t = t_ref[...].astype(jnp.float32)
    z = -t * x                                  # lane-broadcasts (blk,1)*(blk,C)
    # Stable softplus == log(1 + exp(z)) without overflow for large z.
    # (If EUP ever becomes the critical unit on v7x with bf16 inputs, the
    # exp/log term could be evaluated in bf16; kept f32 for v5e + exactness.)
    val = jnp.maximum(z, 0.0) + jnp.log(1.0 + jnp.exp(-jnp.abs(z)))
    if valid_elems is not None:
        blk_rows, c = val.shape
        row = jax.lax.broadcasted_iota(jnp.int32, val.shape, 0)
        col = jax.lax.broadcasted_iota(jnp.int32, val.shape, 1)
        idx = (pl.program_id(0) * blk_rows + row) * c + col
        val = jnp.where(idx < valid_elems, val, 0.0)
    o_ref[...] = jnp.sum(val, axis=0, keepdims=True)


def _pick_block_rows(rows, bytes_per_row):
    cap = _VMEM_TILE_BUDGET // max(bytes_per_row, 1)
    cap = max(8, (cap // _SUBLANE_ALIGN) * _SUBLANE_ALIGN)
    if rows <= 2 * _SUBLANE_ALIGN:
        return rows                              # single full-extent block (always legal)
    # >= 2 blocks so the "parallel" axis can use both v7x TensorCores, while
    # keeping the (masked) overshoot of the last block small.
    return min(cap, _round_up(pl.cdiv(rows, 2), _SUBLANE_ALIGN))


def _partial_sums(x2d, t2d, valid_elems):
    rows, cx = x2d.shape
    ct = t2d.shape[1]
    # VMEM footprint per row (lanes pad to 128 in VMEM regardless of C).
    bytes_per_row = _LANES * (pl.cdiv(cx, _LANES) * x2d.dtype.itemsize
                              + pl.cdiv(ct, _LANES) * t2d.dtype.itemsize)
    blk_rows = _pick_block_rows(rows, bytes_per_row)
    num_blocks = pl.cdiv(rows, blk_rows)
    # Mask only if some element of some block lies outside the valid data
    # (ragged last block and/or <128 elements of flat padding).
    mask = valid_elems if (rows % blk_rows != 0 or valid_elems != rows * cx) else None
    kernel = functools.partial(_soft_logit_partial_kernel, valid_elems=mask)

    partials = pl.pallas_call(
        kernel,
        out_shape=jax.ShapeDtypeStruct((num_blocks, cx), jnp.float32),
        grid=(num_blocks,),
        in_specs=[
            pl.BlockSpec((blk_rows, cx), lambda i: (i, 0)),
            pl.BlockSpec((blk_rows, ct), lambda i: (i, 0)),
        ],
        out_specs=pl.BlockSpec((1, cx), lambda i: (i, 0)),
        compiler_params=pltpu.CompilerParams(
            dimension_semantics=("parallel",),          # megacore-shardable on v7x
            vmem_limit_bytes=_VMEM_LIMIT,
        ),
    )(x2d, t2d)
    return jnp.sum(partials, dtype=jnp.float32)


def _canon_operand(a):
    a = jnp.asarray(a)
    d = a.dtype
    if d == jnp.bool_:
        return a.astype(jnp.float32)
    if jnp.issubdtype(d, jnp.floating):
        return a.astype(jnp.float32) if d.itemsize > 4 else a   # demote f64 (x64 corner)
    if jnp.issubdtype(d, jnp.integer):
        return a.astype(jnp.int32) if d.itemsize > 4 else a
    return a.astype(jnp.float32)


def soft_logit_loss(inp, target):
    """loss = mean(log(1 + exp(-target * input))) with torch broadcasting."""
    inp = _canon_operand(inp)
    target = _canon_operand(target)
    if target.ndim == 1:
        target = target.reshape(-1, 1)

    bshape = tuple(int(s) for s in jnp.broadcast_shapes(inp.shape, target.shape))
    n = math.prod(bshape) if bshape else 1
    if n == 0:
        return jnp.float32(jnp.nan)              # torch mean of empty -> nan

    if len(bshape) == 0:
        r, c = 1, 1
    elif len(bshape) == 1:
        r, c = 1, bshape[0]
    else:
        r, c = math.prod(bshape[:-1]), bshape[-1]

    if inp.shape != bshape:
        # TODO(synk): rare case where the logits themselves broadcast; this
        # materialises the expanded logits in HBM.
        inp = jnp.broadcast_to(inp, bshape)
    x2d = inp.reshape(r, c)

    if target.shape == bshape:
        t2d = target.reshape(r, c)
    elif (target.ndim == len(bshape)
          and tuple(target.shape[:-1]) == bshape[:-1]
          and target.shape[-1] == 1):
        # (..., 1) target: keep it un-broadcast; the kernel lane-broadcasts it.
        t2d = target.reshape(r, 1)
    else:
        # TODO(synk): general broadcast pattern (e.g. (1, C) target);
        # materialises the expanded target in HBM.
        t2d = jnp.broadcast_to(target, bshape).reshape(r, c)

    if t2d.shape == x2d.shape:
        # Pure elementwise case -> lane-dense (rows, 128) slab.
        if n % _LANES == 0:
            x2d = x2d.reshape(n // _LANES, _LANES)           # free reshape, no copy
            t2d = t2d.reshape(n // _LANES, _LANES)
        else:
            # Pad only to the next multiple of 128 (<=127 junk elements,
            # masked in-kernel so they contribute exactly 0).
            n_pad = _round_up(n, _LANES)
            x2d = jnp.pad(x2d.reshape(-1), (0, n_pad - n)).reshape(n_pad // _LANES, _LANES)
            t2d = jnp.pad(t2d.reshape(-1), (0, n_pad - n)).reshape(n_pad // _LANES, _LANES)

    total = _partial_sums(x2d, t2d, n)
    return total / n


def _reference(inp, target):
    inp = jnp.asarray(inp, dtype=jnp.float32)
    target = jnp.asarray(target, dtype=jnp.float32)
    if target.ndim == 1:
        target = target.reshape(-1, 1)
    return jnp.mean(jnp.log(1.0 + jnp.exp(-target * inp)))


if __name__ == "__main__":
    key = jax.random.PRNGKey(0)
    k1, k2, k3, k4, k5, k6 = jax.random.split(key, 6)

    def _check(loss, ref, tag, tol=1e-5):
        loss = jax.block_until_ready(loss)
        assert jnp.allclose(loss, ref, rtol=tol, atol=tol), (tag, loss, ref)

    # 1) canonical use: (N, 1) logits, (N,) +/-1 labels, lane-aligned n.
    N = 256
    x1 = jax.random.normal(k1, (N, 1), dtype=jnp.float32)
    t1 = jnp.where(jax.random.bernoulli(k2, 0.5, (N,)), 1.0, -1.0).astype(jnp.float32)
    _check(soft_logit_loss(x1, t1), _reference(x1, t1), "aligned")

    # 2) broadcasting case: (M, C) logits vs (M,) labels (target stays (M,1) in HBM).
    M, C = 40, 7
    x2 = jax.random.normal(k3, (M, C), dtype=jnp.float32)
    t2 = jnp.where(jax.random.bernoulli(k4, 0.5, (M,)), 1.0, -1.0).astype(jnp.float32)
    _check(soft_logit_loss(x2, t2), _reference(x2, t2), "broadcast")

    # 3) ragged n (not a multiple of 128) -> in-kernel element-mask path.
    x3 = jax.random.normal(k5, (100, 1), dtype=jnp.float32)
    t3 = jnp.where(jax.random.bernoulli(k6, 0.5, (100,)), 1.0, -1.0).astype(jnp.float32)
    _check(soft_logit_loss(x3, t3), _reference(x3, t3), "ragged")

    # 4) multi-block grid + native bf16 logits (cast to f32 inside the kernel).
    N4 = 80 * 128
    x4 = jax.random.normal(k1, (N4, 1), dtype=jnp.bfloat16)
    t4 = jnp.where(jax.random.bernoulli(k2, 0.5, (N4,)), 1.0, -1.0).astype(jnp.float32)
    _check(soft_logit_loss(x4, t4), _reference(x4, t4), "multiblock_bf16")

    print("KERNEL_OK")
</pallas_src>

<mosaic_0001>
module attributes {stable_mosaic.version = 11 : i64} {
  func.func @_soft_logit_partial_kernel(%arg0: i32, %arg1: memref<2x128xf32, #tpu.memory_space<vmem>>, %arg2: memref<2x128xf32, #tpu.memory_space<vmem>>, %arg3: memref<1x128xf32, #tpu.memory_space<vmem>>) attributes {dimension_semantics = [#tpu.dimension_semantics<parallel>], iteration_bounds = array<i64: 1>, scalar_prefetch = 0 : i64, scratch_operands = 0 : i64, tpu.core_type = #tpu.core_type<tc>, window_params = [{transform_indices = @transform_0, window_bounds = array<i64: 2, 128>}, {transform_indices = @transform_1, window_bounds = array<i64: 2, 128>}, {transform_indices = @transform_2, window_bounds = array<i64: 1, 128>}]} {
    %c0 = arith.constant 0 : index
    %c0_0 = arith.constant 0 : index
    %0 = vector.load %arg1[%c0, %c0_0] : memref<2x128xf32, #tpu.memory_space<vmem>>, vector<2x128xf32>
    %c0_1 = arith.constant 0 : index
    %c0_2 = arith.constant 0 : index
    %1 = vector.load %arg2[%c0_1, %c0_2] : memref<2x128xf32, #tpu.memory_space<vmem>>, vector<2x128xf32>
    %cst = arith.constant 0.000000e+00 : f32
    %2 = vector.broadcast %cst : f32 to vector<2x128xf32>
    %3 = arith.subf %2, %1 : vector<2x128xf32>
    %4 = arith.mulf %3, %0 : vector<2x128xf32>
    %cst_3 = arith.constant 0.000000e+00 : f32
    %5 = vector.broadcast %cst_3 : f32 to vector<2x128xf32>
    %6 = arith.maximumf %4, %5 : vector<2x128xf32>
    %7 = math.absf %4 : vector<2x128xf32>
    %cst_4 = arith.constant 0.000000e+00 : f32
    %8 = vector.broadcast %cst_4 : f32 to vector<2x128xf32>
    %9 = arith.subf %8, %7 : vector<2x128xf32>
    %10 = math.exp %9 : vector<2x128xf32>
    %cst_5 = arith.constant 1.000000e+00 : f32
    %11 = vector.broadcast %cst_5 : f32 to vector<2x128xf32>
    %12 = arith.addf %11, %10 : vector<2x128xf32>
    %13 = math.log %12 : vector<2x128xf32>
    %14 = arith.addf %6, %13 : vector<2x128xf32>
    %cst_6 = arith.constant dense<0.000000e+00> : vector<128xf32>
    %15 = vector.multi_reduction <add>, %14, %cst_6 [0] : vector<2x128xf32> to vector<128xf32>
    %16 = vector.shape_cast %15 : vector<128xf32> to vector<1x128xf32>
    %c0_7 = arith.constant 0 : index
    %c0_8 = arith.constant 0 : index
    %17 = vector.load %arg3[%c0_7, %c0_8] : memref<1x128xf32, #tpu.memory_space<vmem>>, vector<1x128xf32>
    tpu.vector_store %arg3[%c0_7, %c0_8], %16 {strides = array<i32>} : memref<1x128xf32, #tpu.memory_space<vmem>>, vector<1x128xf32>,
    return
  }
  func.func @transform_0(%arg0: i32) -> (i32, i32) {
    %c0_i32 = arith.constant 0 : i32
    %c0_i32_0 = arith.constant 0 : i32
    return %arg0, %c0_i32 : i32, i32
  }
  func.func @transform_1(%arg0: i32) -> (i32, i32) {
    %c0_i32 = arith.constant 0 : i32
    %c0_i32_0 = arith.constant 0 : i32
    return %arg0, %c0_i32 : i32, i32
  }
  func.func @transform_2(%arg0: i32) -> (i32, i32) {
    %c0_i32 = arith.constant 0 : i32
    %c0_i32_0 = arith.constant 0 : i32
    return %arg0, %c0_i32 : i32, i32
  }
}

</mosaic_0001>

<llo_original>
// kernel: tpu_custom_call.1
$region0: #{tpu_custom_call.1}
  #allocation0 [shape = 'u32[]', space=smem, size = 0x4, offset = 0x4, fixed_abs, tag = 'smem constant byte address 0x4 - core index']
  #allocation1 [shape = 'u32[144,128]{1,0:T(1,128)}', space=vmem, size = 0x12000, scoped, tag = 'internal scratch']
  %s0 = inlined_call_operand.hbm [shape: f32[2,128], index: 0, kind: input, shape index: {}]
  %s1 = inlined_call_operand.hbm [shape: f32[2,128], index: 1, kind: input, shape index: {}]
  %s2 = inlined_call_operand.hbm [shape: f32[1,128], index: 2, kind: output, shape index: {}]
  %s3 = sld [smem:[#allocation0]]
  $region26: #{tpu_custom_call.1} parent=0
    _
  %s5 = ssub.s32 1, %s3
  %s6 = scalar_select 0, %s5, %s3
  $region1: #{tpu_custom_call.1} parent=0
    #allocation2 [shape = 'u8[1024]{0}', space=vmem, size = 0x400, scoped, tag = 'input window, operand 0, single buffered']
    #allocation3 [shape = 's32[1]{0}', space=sflag, size = 0x4, scoped, tag = 'scoped memory for tpu_custom_call.1']
    #allocation4 [shape = 's32[1]{0}', space=sflag, size = 0x4, scoped, tag = 'scoped memory for tpu_custom_call.1']
    #allocation5 [shape = 'u8[1024]{0}', space=vmem, size = 0x400, scoped, tag = 'input window, operand 1, single buffered']
    #allocation6 [shape = 's32[1]{0}', space=sflag, size = 0x4, scoped, tag = 'scoped memory for tpu_custom_call.1']
    #allocation7 [shape = 'u8[512]{0}', space=vmem, size = 0x400, scoped, tag = 'output window, operand 0, single buffered']
    %7 = vsyncpa [#allocation3], 0
    %8 = vsyncpa [#allocation6], 0
    %9 = vsyncpa [#allocation4], 0
    // Predicated region
    $region2: #{tpu_custom_call.1} parent=1 // pred_check
      _
    $region3: #{tpu_custom_call.1} parent=1 // pred_check_branch
      %11 = sbr.rel (0) target = $region5
    $region4: #{tpu_custom_call.1} parent=1 // pred_region
      %s13 = ssub.s32 32, 32
      %14 = vsyncadd [#allocation3], %s13
      %s16 = sshll.u32 [#allocation2], 4
      %s17 = int_to_ptr.vmem [resolvable:$true] %s16
      %19 = dma.hbm_to_vmem [thread:$0]  %s0, 32, %s17, [#allocation3]
    $region5: #{tpu_custom_call.1} parent=1 // pred_fallthru
      _
    // Predicated region
    $region6: #{tpu_custom_call.1} parent=1 // pred_check
      _
    $region7: #{tpu_custom_call.1} parent=1 // pred_check_branch
      %21 = sbr.rel (0) target = $region9
    $region8: #{tpu_custom_call.1} parent=1 // pred_region
      %s23 = ssub.s32 32, 32
      %24 = vsyncadd [#allocation6], %s23
      %s26 = sshll.u32 [#allocation5], 4
      %s27 = int_to_ptr.vmem [resolvable:$true] %s26
      %29 = dma.hbm_to_vmem [thread:$0]  %s1, 32, %s27, [#allocation6]
    $region9: #{tpu_custom_call.1} parent=1 // pred_fallthru
      _
    // Predicated region
    $region10: #{tpu_custom_call.1} parent=1 // pred_check
      _
    $region11: #{tpu_custom_call.1} parent=1 // pred_check_branch
      %31 = sbr.rel (0) target = $region13
    $region12: #{tpu_custom_call.1} parent=1 // pred_region
      %32 = dma.done [#allocation3], 32
    $region13: #{tpu_custom_call.1} parent=1 // pred_fallthru
      _
    // Predicated region
    $region14: #{tpu_custom_call.1} parent=1 // pred_check
      _
    $region15: #{tpu_custom_call.1} parent=1 // pred_check_branch
      %34 = sbr.rel (0) target = $region17
    $region16: #{tpu_custom_call.1} parent=1 // pred_region
      %35 = dma.done [#allocation6], 32
    $region17: #{tpu_custom_call.1} parent=1 // pred_fallthru
      _
    %v36 = vld [vmem:[#allocation2] sm:$0x3]
    %v37 = vld [vmem:[#allocation5] sm:$0x3]
    %v38 = vsub.f32 0.0, %v37
    %v39 = vmul.f32 %v38, %v36
    %v40 = vmax.f32 %v39, 0.0
    %v41 = vand.u32 2147483647, %v39
    %v42 = vsub.f32 0.0, %v41
    %v43 = vmul.f32 %v42, 1.442695
    %v44 = vpow.pop %v43
    %v45 = vadd.f32 %v44, 1.0
    %v46 = vlog2.pop %v45
    %v47 = vmul.f32 %v46, 0.6931472
    %v48 = vadd.f32 %v40, %v47
    %vm49 = vcmask 1041408
    %v50 = vsel %vm49, %v48, 0.0
    %v51 = vrot.slane %v50, 4
    %v52 = vadd.f32 %v50, %v51
    %v53 = vrot.slane %v52, 2
    %v54 = vadd.f32 %v52, %v53
    %v55 = vrot.slane %v54, 1
    %v56 = vadd.f32 %v54, %v55
    %57 = vst [vmem:[#allocation7] sm:$0x1] %v56
    // Predicated region
    $region18: #{tpu_custom_call.1} parent=1 // pred_check
      _
    $region19: #{tpu_custom_call.1} parent=1 // pred_check_branch
      %59 = sbr.rel (0) target = $region21
    $region20: #{tpu_custom_call.1} parent=1 // pred_region
      %s61 = ssub.s32 16, 16
      %62 = vsyncadd [#allocation4], %s61
      %s64 = sshll.u32 [#allocation7], 4
      %s65 = int_to_ptr.vmem [resolvable:$true] %s64
      %67 = dma.vmem_to_hbm [thread:$0]  %s65, 16, %s2, [#allocation4]
    $region21: #{tpu_custom_call.1} parent=1 // pred_fallthru
      _
    // Predicated region
    $region22: #{tpu_custom_call.1} parent=1 // pred_check
      _
    $region23: #{tpu_custom_call.1} parent=1 // pred_check_branch
      %69 = sbr.rel (0) target = $region25
    $region24: #{tpu_custom_call.1} parent=1 // pred_region
      %70 = dma.done [#allocation4], 16
    $region25: #{tpu_custom_call.1} parent=1 // pred_fallthru
      _
    %71 = vsyncpa [#allocation3], 1
    %72 = vsyncpa [#allocation6], 1
    %73 = vsyncpa [#allocation4], 1

</llo_original>
